<compile_context>
chip_gen: v7x
topology: tpu7x:2x2x1
jax: 0.10.0
libtpu: 0.0.40
codegen_flags: <defaults>
</compile_context>

<pallas_src>
import functools

import jax
import jax.numpy as jnp
import numpy as np
from jax.experimental import pallas as pl
from jax.experimental.pallas import tpu as pltpu


def _smooth_l1(d):
    ad = jnp.abs(d)
    return jnp.where(ad < 1.0, 0.5 * d * d, ad - 0.5)


def _make_ssd_loss_kernel(n_bisect):
    """Kernel over one batch block of B samples (blocks are (B,4,D)/(B,D))."""

    def kernel(ploc_ref, gloc_ref, x_ref, y_ref, a_ref, binv_ref, c_ref, out_ref):
        ploc = ploc_ref[...].astype(jnp.float32)   # (B, 4, D) predicted boxes
        gloc = gloc_ref[...].astype(jnp.float32)   # (B, 4, D) ground-truth boxes
        x = x_ref[...].astype(jnp.float32)         # (B, D) class logits
        yl = y_ref[...]                            # (B, D) integer labels
        a = a_ref[...]                             # (4, D): db_xy on planes 0-1, 0 else
        binv = binv_ref[...]                       # (4, D): 1/db_wh on planes 0-1, 1 else
        c = c_ref[...]                             # (4, D): log(db_wh) on planes 2-3, 0 else

        B, D = x.shape

        mask = yl > 0                              # (B, D) positives
        y = yl.astype(jnp.float32)
        pos_num = jnp.sum(jnp.where(mask, 1.0, 0.0), axis=-1, keepdims=True)  # (B,1)

        # ---- localization: _loc_vec + SmoothL1 on positives (scale_xy=wh=1) ----
        # vec_gd = (gloc_xy - db_xy)/db_wh on planes 0-1, log(gloc_wh/db_wh) on 2-3.
        plane = jax.lax.broadcasted_iota(jnp.int32, (1, 4, D), 1)
        is_xy = plane < 2
        g_xy = (gloc - a) * binv                   # valid on planes 0-1
        g_wh = jnp.log(gloc) - c                   # valid on planes 2-3 (NaN elsewhere OK)
        vec_gd = jnp.where(is_xy, g_xy, g_wh)      # select discards NaN branch
        sl1 = jnp.sum(_smooth_l1(ploc - vec_gd), axis=1)                      # (B, D)
        sl1_loss = jnp.sum(jnp.where(mask, sl1, 0.0), axis=-1, keepdims=True)  # (B, 1)

        # ---- confidence: BCEWithLogits (reduction='none') ----
        con = jnp.maximum(x, 0.0) - x * y + jnp.log(1.0 + jnp.exp(-jnp.abs(x)))
        con_neg = jnp.where(mask, 0.0, con)        # positives zeroed

        # ---- hard-negative mining: top-(3*pos_num) via threshold bisection ----
        # Invariant: count(con_neg > hi) <= k at every step, so we never
        # over-select.  Ties at the threshold are vanishingly unlikely for
        # float logits and only affect near-zero-loss negatives.
        k = jnp.minimum(3.0 * pos_num, jnp.float32(D))
        lo0 = jnp.zeros_like(pos_num)
        hi0 = jnp.max(con_neg, axis=-1, keepdims=True)

        def body(_, carry):
            lo, hi = carry
            mid = 0.5 * (lo + hi)
            cnt = jnp.sum(jnp.where(con_neg > mid, 1.0, 0.0),
                          axis=-1, keepdims=True)
            too_many = cnt > k
            return jnp.where(too_many, mid, lo), jnp.where(too_many, hi, mid)

        _, thr = jax.lax.fori_loop(0, n_bisect, body, (lo0, hi0))
        neg_mask = con_neg > thr                   # (B, D)

        sel = jnp.logical_or(mask, neg_mask)
        closs = jnp.sum(jnp.where(sel, con, 0.0), axis=-1, keepdims=True)  # (B,1)

        # ---- combine / normalize per sample ----
        total = sl1_loss + closs
        num_mask = (pos_num > 0.0).astype(jnp.float32)
        per_sample = total * num_mask / jnp.maximum(pos_num, 1e-6)        # (B,1)
        # lane-dense store (unmasked vst); wrapper reads column 0.
        out_ref[...] = jnp.broadcast_to(per_sample, (per_sample.shape[0], 128))

    return kernel


@functools.partial(jax.jit, static_argnames=("block_b", "n_bisect"))
def ssd_loss(ploc, plabel, gloc, glabel, dboxes, block_b=16, n_bisect=20):
    """ploc (N,4,D) f32, plabel (N,1,D) f32, gloc (N,4,D) f32, glabel (N,D) int,
    dboxes (4,D) f32 (xywh).  Returns scalar loss (matches PyTorch Loss.forward)."""
    N, four, D = ploc.shape
    assert four == 4

    # plabel.squeeze(1): dropping the unit dim is a free reshape (no HBM copy).
    x = plabel.reshape(N, D)

    # Hoisted dboxes preprocessing (tiny, constant across the whole grid).
    db_xy = dboxes[:2].astype(jnp.float32)
    db_wh = dboxes[2:].astype(jnp.float32)
    zeros2 = jnp.zeros_like(db_xy)
    a_pack = jnp.concatenate([db_xy, zeros2], axis=0)                       # (4, D)
    binv_pack = jnp.concatenate([1.0 / db_wh, jnp.ones_like(db_wh)], axis=0)  # (4, D)
    c_pack = jnp.concatenate([zeros2, jnp.log(db_wh)], axis=0)              # (4, D)

    # Effective batch block: multiple of 8 (sublane aligned) or exactly N.
    if N <= block_b:
        B = N
    else:
        B = max(8, (block_b // 8) * 8)
    grid = (pl.cdiv(N, B),)

    kernel = _make_ssd_loss_kernel(n_bisect)
    out = pl.pallas_call(
        kernel,
        out_shape=jax.ShapeDtypeStruct((N, 128), jnp.float32),
        grid=grid,
        in_specs=[
            pl.BlockSpec((B, 4, D), lambda b: (b, 0, 0)),   # ploc (N,4,D)
            pl.BlockSpec((B, 4, D), lambda b: (b, 0, 0)),   # gloc (N,4,D)
            pl.BlockSpec((B, D), lambda b: (b, 0)),         # plabel logits (N,D)
            pl.BlockSpec((B, D), lambda b: (b, 0)),         # glabel (N,D) int
            pl.BlockSpec((4, D), lambda b: (0, 0)),         # a_pack
            pl.BlockSpec((4, D), lambda b: (0, 0)),         # binv_pack
            pl.BlockSpec((4, D), lambda b: (0, 0)),         # c_pack
        ],
        out_specs=pl.BlockSpec((B, 128), lambda b: (b, 0)),
        compiler_params=pltpu.CompilerParams(
            dimension_semantics=("parallel",),
            vmem_limit_bytes=64 * 1024 * 1024),
    )(ploc, gloc, x, glabel, a_pack, binv_pack, c_pack)

    return jnp.mean(out[:, 0])                               # .mean(dim=0)


def ssd_loss_ref(ploc, plabel, gloc, glabel, dboxes):
    """Pure-JAX reference mirroring the PyTorch forward."""
    db = dboxes[None]                                        # (1, 4, D)
    mask = glabel > 0
    pos_num = mask.sum(axis=1)
    gxy = (gloc[:, :2, :] - db[:, :2, :]) / db[:, 2:, :]
    gwh = jnp.log(gloc[:, 2:, :] / db[:, 2:, :])
    vec_gd = jnp.concatenate([gxy, gwh], axis=1)
    d = ploc - vec_gd
    ad = jnp.abs(d)
    sl1 = jnp.where(ad < 1.0, 0.5 * d * d, ad - 0.5).sum(axis=1)
    sl1 = (mask.astype(jnp.float32) * sl1).sum(axis=1)
    x = plabel[:, 0, :]
    y = glabel.astype(jnp.float32)
    con = jnp.maximum(x, 0.0) - x * y + jnp.log(1.0 + jnp.exp(-jnp.abs(x)))
    con_neg = jnp.where(mask, 0.0, con)
    con_idx = jnp.argsort(-con_neg, axis=1)                  # stable descending
    con_rank = jnp.argsort(con_idx, axis=1)
    neg_num = jnp.minimum(3 * pos_num, mask.shape[1])[:, None]
    neg_mask = con_rank < neg_num
    closs = (con * jnp.logical_or(mask, neg_mask).astype(jnp.float32)).sum(axis=1)
    total = sl1 + closs
    num_mask = (pos_num > 0).astype(jnp.float32)
    pos_f = jnp.maximum(pos_num.astype(jnp.float32), 1e-6)
    return jnp.mean(total * num_mask / pos_f)


def _make_inputs(N, D, seed=0):
    kd1, kd2 = jax.random.split(jax.random.PRNGKey(42))
    db_xy = jax.random.uniform(kd1, (2, D), minval=0.0, maxval=1.0)
    db_wh = jax.random.uniform(kd2, (2, D), minval=0.05, maxval=0.5)
    dboxes = jnp.concatenate([db_xy, db_wh], axis=0).astype(jnp.float32)  # (4, D)

    key = jax.random.PRNGKey(seed)
    k1, k2, k3, k4, k5, k6 = jax.random.split(key, 6)
    ploc = jax.random.normal(k1, (N, 4, D), jnp.float32)
    plabel = jax.random.normal(k2, (N, 1, D), jnp.float32)
    g_xy = jax.random.normal(k3, (N, 2, D), jnp.float32) * 0.1
    g_wh = jax.random.uniform(k4, (N, 2, D), minval=0.1, maxval=2.0)
    gloc = jnp.concatenate([g_xy, g_wh], axis=1).astype(jnp.float32)
    cls = jax.random.randint(k5, (N, D), 1, 4)
    keep = jax.random.uniform(k6, (N, D)) < 0.15
    glabel = jnp.where(keep, cls, 0).astype(jnp.int32)
    return ploc, plabel, gloc, glabel, dboxes


if __name__ == "__main__":
    # Deterministic small stand-ins for (batch, 8732 default boxes).
    # 1) lane-aligned case (D multiple of 128), single partial batch block.
    ploc, plabel, gloc, glabel, dboxes = _make_inputs(N=2, D=256, seed=0)
    out = jax.block_until_ready(ssd_loss(ploc, plabel, gloc, glabel, dboxes))
    ref = ssd_loss_ref(ploc, plabel, gloc, glabel, dboxes)
    np.testing.assert_allclose(np.asarray(out), np.asarray(ref), rtol=1e-3, atol=1e-3)

    # 2) non-128-aligned D (no padding anywhere; block dim == array dim).
    ploc2, plabel2, gloc2, glabel2, dboxes2 = _make_inputs(N=3, D=200, seed=1)
    out2 = jax.block_until_ready(ssd_loss(ploc2, plabel2, gloc2, glabel2, dboxes2))
    ref2 = ssd_loss_ref(ploc2, plabel2, gloc2, glabel2, dboxes2)
    np.testing.assert_allclose(np.asarray(out2), np.asarray(ref2), rtol=1e-3, atol=1e-3)

    # 3) grid > 1 with a partial last batch block (N % block_b != 0, no padding).
    ploc3, plabel3, gloc3, glabel3, dboxes3 = _make_inputs(N=10, D=256, seed=2)
    out3 = jax.block_until_ready(
        ssd_loss(ploc3, plabel3, gloc3, glabel3, dboxes3, block_b=8))
    ref3 = ssd_loss_ref(ploc3, plabel3, gloc3, glabel3, dboxes3)
    np.testing.assert_allclose(np.asarray(out3), np.asarray(ref3), rtol=1e-3, atol=1e-3)

    print("KERNEL_OK")
</pallas_src>

<mosaic_0001>
module attributes {stable_mosaic.version = 11 : i64} {
  func.func @kernel(%arg0: i32, %arg1: memref<2x4x256xf32, #tpu.memory_space<vmem>>, %arg2: memref<2x4x256xf32, #tpu.memory_space<vmem>>, %arg3: memref<2x256xf32, #tpu.memory_space<vmem>>, %arg4: memref<2x256xi32, #tpu.memory_space<vmem>>, %arg5: memref<4x256xf32, #tpu.memory_space<vmem>>, %arg6: memref<4x256xf32, #tpu.memory_space<vmem>>, %arg7: memref<4x256xf32, #tpu.memory_space<vmem>>, %arg8: memref<2x128xf32, #tpu.memory_space<vmem>>) attributes {dimension_semantics = [#tpu.dimension_semantics<parallel>], iteration_bounds = array<i64: 1>, scalar_prefetch = 0 : i64, scratch_operands = 0 : i64, tpu.core_type = #tpu.core_type<tc>, window_params = [{transform_indices = @transform_0, window_bounds = array<i64: 2, 4, 256>}, {transform_indices = @transform_1, window_bounds = array<i64: 2, 4, 256>}, {transform_indices = @transform_2, window_bounds = array<i64: 2, 256>}, {transform_indices = @transform_3, window_bounds = array<i64: 2, 256>}, {pipeline_mode = #tpu.pipeline_mode<synchronous>, transform_indices = @transform_4, window_bounds = array<i64: 4, 256>}, {pipeline_mode = #tpu.pipeline_mode<synchronous>, transform_indices = @transform_5, window_bounds = array<i64: 4, 256>}, {pipeline_mode = #tpu.pipeline_mode<synchronous>, transform_indices = @transform_6, window_bounds = array<i64: 4, 256>}, {transform_indices = @transform_7, window_bounds = array<i64: 2, 128>}]} {
    %c0 = arith.constant 0 : index
    %c0_0 = arith.constant 0 : index
    %c0_1 = arith.constant 0 : index
    %0 = vector.load %arg1[%c0, %c0_0, %c0_1] : memref<2x4x256xf32, #tpu.memory_space<vmem>>, vector<2x4x256xf32>
    %c0_2 = arith.constant 0 : index
    %c0_3 = arith.constant 0 : index
    %c0_4 = arith.constant 0 : index
    %1 = vector.load %arg2[%c0_2, %c0_3, %c0_4] : memref<2x4x256xf32, #tpu.memory_space<vmem>>, vector<2x4x256xf32>
    %c0_5 = arith.constant 0 : index
    %c0_6 = arith.constant 0 : index
    %2 = vector.load %arg3[%c0_5, %c0_6] : memref<2x256xf32, #tpu.memory_space<vmem>>, vector<2x256xf32>
    %c0_7 = arith.constant 0 : index
    %c0_8 = arith.constant 0 : index
    %3 = vector.load %arg4[%c0_7, %c0_8] : memref<2x256xi32, #tpu.memory_space<vmem>>, vector<2x256xi32>
    %c0_9 = arith.constant 0 : index
    %c0_10 = arith.constant 0 : index
    %4 = vector.load %arg5[%c0_9, %c0_10] : memref<4x256xf32, #tpu.memory_space<vmem>>, vector<4x256xf32>
    %c0_11 = arith.constant 0 : index
    %c0_12 = arith.constant 0 : index
    %5 = vector.load %arg6[%c0_11, %c0_12] : memref<4x256xf32, #tpu.memory_space<vmem>>, vector<4x256xf32>
    %c0_13 = arith.constant 0 : index
    %c0_14 = arith.constant 0 : index
    %6 = vector.load %arg7[%c0_13, %c0_14] : memref<4x256xf32, #tpu.memory_space<vmem>>, vector<4x256xf32>
    %c0_i32 = arith.constant 0 : i32
    %7 = vector.broadcast %c0_i32 : i32 to vector<2x256xi32>
    %8 = arith.cmpi sgt, %3, %7 : vector<2x256xi32>
    %9 = arith.sitofp %3 : vector<2x256xi32> to vector<2x256xf32>
    %cst = arith.constant 1.000000e+00 : f32
    %cst_15 = arith.constant 0.000000e+00 : f32
    %10 = vector.broadcast %cst : f32 to vector<2x256xf32>
    %11 = vector.broadcast %cst_15 : f32 to vector<2x256xf32>
    %12 = arith.select %8, %10, %11 : vector<2x256xi1>, vector<2x256xf32>
    %cst_16 = arith.constant dense<0.000000e+00> : vector<2xf32>
    %13 = vector.multi_reduction <add>, %12, %cst_16 [1] : vector<2x256xf32> to vector<2xf32>
    %14 = vector.shape_cast %13 : vector<2xf32> to vector<2x1xf32>
    %15 = tpu.iota {dimensions = array<i32: 1>} : vector<1x4x256xi32>
    %c2_i32 = arith.constant 2 : i32
    %16 = vector.broadcast %c2_i32 : i32 to vector<1x4x256xi32>
    %17 = arith.cmpi slt, %15, %16 : vector<1x4x256xi32>
    %18 = vector.shape_cast %4 : vector<4x256xf32> to vector<1x4x256xf32>
    %19 = vector.broadcast %18 : vector<1x4x256xf32> to vector<2x4x256xf32>
    %20 = arith.subf %1, %19 : vector<2x4x256xf32>
    %21 = vector.shape_cast %5 : vector<4x256xf32> to vector<1x4x256xf32>
    %22 = vector.broadcast %21 : vector<1x4x256xf32> to vector<2x4x256xf32>
    %23 = arith.mulf %20, %22 : vector<2x4x256xf32>
    %24 = math.log %1 : vector<2x4x256xf32>
    %25 = vector.shape_cast %6 : vector<4x256xf32> to vector<1x4x256xf32>
    %26 = vector.broadcast %25 : vector<1x4x256xf32> to vector<2x4x256xf32>
    %27 = arith.subf %24, %26 : vector<2x4x256xf32>
    %28 = vector.shape_cast %17 : vector<1x4x256xi1> to vector<1x4x256xi1>
    %29 = vector.broadcast %28 : vector<1x4x256xi1> to vector<2x4x256xi1>
    %30 = arith.select %29, %23, %27 : vector<2x4x256xi1>, vector<2x4x256xf32>
    %31 = arith.subf %0, %30 : vector<2x4x256xf32>
    %32 = math.absf %31 : vector<2x4x256xf32>
    %cst_17 = arith.constant 1.000000e+00 : f32
    %33 = vector.broadcast %cst_17 : f32 to vector<2x4x256xf32>
    %34 = arith.cmpf olt, %32, %33 : vector<2x4x256xf32>
    %cst_18 = arith.constant 5.000000e-01 : f32
    %35 = vector.broadcast %cst_18 : f32 to vector<2x4x256xf32>
    %36 = arith.mulf %35, %31 : vector<2x4x256xf32>
    %37 = arith.mulf %36, %31 : vector<2x4x256xf32>
    %cst_19 = arith.constant 5.000000e-01 : f32
    %38 = vector.broadcast %cst_19 : f32 to vector<2x4x256xf32>
    %39 = arith.subf %32, %38 : vector<2x4x256xf32>
    %40 = arith.select %34, %37, %39 : vector<2x4x256xi1>, vector<2x4x256xf32>
    %cst_20 = arith.constant dense<0.000000e+00> : vector<2x256xf32>
    %41 = vector.multi_reduction <add>, %40, %cst_20 [1] : vector<2x4x256xf32> to vector<2x256xf32>
    %cst_21 = arith.constant 0.000000e+00 : f32
    %42 = vector.broadcast %cst_21 : f32 to vector<2x256xf32>
    %43 = arith.select %8, %41, %42 : vector<2x256xi1>, vector<2x256xf32>
    %cst_22 = arith.constant dense<0.000000e+00> : vector<2xf32>
    %44 = vector.multi_reduction <add>, %43, %cst_22 [1] : vector<2x256xf32> to vector<2xf32>
    %45 = vector.shape_cast %44 : vector<2xf32> to vector<2x1xf32>
    %cst_23 = arith.constant 0.000000e+00 : f32
    %46 = vector.broadcast %cst_23 : f32 to vector<2x256xf32>
    %47 = arith.maximumf %2, %46 : vector<2x256xf32>
    %48 = arith.mulf %2, %9 : vector<2x256xf32>
    %49 = arith.subf %47, %48 : vector<2x256xf32>
    %50 = math.absf %2 : vector<2x256xf32>
    %cst_24 = arith.constant 0.000000e+00 : f32
    %51 = vector.broadcast %cst_24 : f32 to vector<2x256xf32>
    %52 = arith.subf %51, %50 : vector<2x256xf32>
    %53 = math.exp %52 : vector<2x256xf32>
    %cst_25 = arith.constant 1.000000e+00 : f32
    %54 = vector.broadcast %cst_25 : f32 to vector<2x256xf32>
    %55 = arith.addf %54, %53 : vector<2x256xf32>
    %56 = math.log %55 : vector<2x256xf32>
    %57 = arith.addf %49, %56 : vector<2x256xf32>
    %cst_26 = arith.constant 0.000000e+00 : f32
    %58 = vector.broadcast %cst_26 : f32 to vector<2x256xf32>
    %59 = arith.select %8, %58, %57 : vector<2x256xi1>, vector<2x256xf32>
    %cst_27 = arith.constant 3.000000e+00 : f32
    %60 = vector.broadcast %cst_27 : f32 to vector<2x1xf32>
    %61 = arith.mulf %60, %14 : vector<2x1xf32>
    %cst_28 = arith.constant 2.560000e+02 : f32
    %62 = vector.broadcast %cst_28 : f32 to vector<2x1xf32>
    %63 = arith.minimumf %61, %62 : vector<2x1xf32>
    %cst_29 = arith.constant 0.000000e+00 : f32
    %64 = vector.broadcast %cst_29 : f32 to vector<2x1xf32>
    %cst_30 = arith.constant dense<0xFF800000> : vector<2xf32>
    %65 = vector.multi_reduction <maximumf>, %59, %cst_30 [1] : vector<2x256xf32> to vector<2xf32>
    %66 = vector.shape_cast %65 : vector<2xf32> to vector<2x1xf32>
    %c0_i32_31 = arith.constant 0 : i32
    %c20_i32 = arith.constant 20 : i32
    %67 = arith.addi %c0_i32_31, %c20_i32 : i32
    %c1_i32 = arith.constant 1 : i32
    %68:2 = scf.for %arg9 = %c0_i32_31 to %67 step %c1_i32 iter_args(%arg10 = %64, %arg11 = %66) -> (vector<2x1xf32>, vector<2x1xf32>)  : i32 {
      %88 = arith.addf %arg10, %arg11 : vector<2x1xf32>
      %cst_38 = arith.constant 5.000000e-01 : f32
      %89 = vector.broadcast %cst_38 : f32 to vector<2x1xf32>
      %90 = arith.mulf %89, %88 : vector<2x1xf32>
      %91 = vector.broadcast %90 : vector<2x1xf32> to vector<2x256xf32>
      %92 = arith.cmpf ogt, %59, %91 : vector<2x256xf32>
      %cst_39 = arith.constant 1.000000e+00 : f32
      %cst_40 = arith.constant 0.000000e+00 : f32
      %93 = vector.broadcast %cst_39 : f32 to vector<2x256xf32>
      %94 = vector.broadcast %cst_40 : f32 to vector<2x256xf32>
      %95 = arith.select %92, %93, %94 : vector<2x256xi1>, vector<2x256xf32>
      %cst_41 = arith.constant dense<0.000000e+00> : vector<2xf32>
      %96 = vector.multi_reduction <add>, %95, %cst_41 [1] : vector<2x256xf32> to vector<2xf32>
      %97 = vector.shape_cast %96 : vector<2xf32> to vector<2x1xf32>
      %98 = arith.cmpf ogt, %97, %63 : vector<2x1xf32>
      %99 = arith.select %98, %90, %arg10 : vector<2x1xi1>, vector<2x1xf32>
      %100 = arith.select %98, %arg11, %90 : vector<2x1xi1>, vector<2x1xf32>
      scf.yield %99, %100 : vector<2x1xf32>, vector<2x1xf32>
    }
    %69 = vector.broadcast %68#1 : vector<2x1xf32> to vector<2x256xf32>
    %70 = arith.cmpf ogt, %59, %69 : vector<2x256xf32>
    %71 = arith.ori %8, %70 : vector<2x256xi1>
    %cst_32 = arith.constant 0.000000e+00 : f32
    %72 = vector.broadcast %cst_32 : f32 to vector<2x256xf32>
    %73 = arith.select %71, %57, %72 : vector<2x256xi1>, vector<2x256xf32>
    %cst_33 = arith.constant dense<0.000000e+00> : vector<2xf32>
    %74 = vector.multi_reduction <add>, %73, %cst_33 [1] : vector<2x256xf32> to vector<2xf32>
    %75 = vector.shape_cast %74 : vector<2xf32> to vector<2x1xf32>
    %76 = arith.addf %45, %75 : vector<2x1xf32>
    %cst_34 = arith.constant 0.000000e+00 : f32
    %77 = vector.broadcast %cst_34 : f32 to vector<2x1xf32>
    %78 = arith.cmpf ogt, %14, %77 : vector<2x1xf32>
    %79 = arith.extui %78 : vector<2x1xi1> to vector<2x1xi32>
    %80 = arith.sitofp %79 : vector<2x1xi32> to vector<2x1xf32>
    %81 = arith.mulf %76, %80 : vector<2x1xf32>
    %cst_35 = arith.constant 9.99999997E-7 : f32
    %82 = vector.broadcast %cst_35 : f32 to vector<2x1xf32>
    %83 = arith.maximumf %14, %82 : vector<2x1xf32>
    %84 = arith.divf %81, %83 : vector<2x1xf32>
    %85 = vector.shape_cast %84 : vector<2x1xf32> to vector<2x1xf32>
    %86 = vector.broadcast %85 : vector<2x1xf32> to vector<2x128xf32>
    %c0_36 = arith.constant 0 : index
    %c0_37 = arith.constant 0 : index
    %87 = vector.load %arg8[%c0_36, %c0_37] : memref<2x128xf32, #tpu.memory_space<vmem>>, vector<2x128xf32>
    tpu.vector_store %arg8[%c0_36, %c0_37], %86 {strides = array<i32>} : memref<2x128xf32, #tpu.memory_space<vmem>>, vector<2x128xf32>,
    return
  }
  func.func @transform_0(%arg0: i32) -> (i32, i32, i32) {
    %c0_i32 = arith.constant 0 : i32
    %c0_i32_0 = arith.constant 0 : i32
    %c0_i32_1 = arith.constant 0 : i32
    return %arg0, %c0_i32, %c0_i32_0 : i32, i32, i32
  }
  func.func @transform_1(%arg0: i32) -> (i32, i32, i32) {
    %c0_i32 = arith.constant 0 : i32
    %c0_i32_0 = arith.constant 0 : i32
    %c0_i32_1 = arith.constant 0 : i32
    return %arg0, %c0_i32, %c0_i32_0 : i32, i32, i32
  }
  func.func @transform_2(%arg0: i32) -> (i32, i32) {
    %c0_i32 = arith.constant 0 : i32
    %c0_i32_0 = arith.constant 0 : i32
    return %arg0, %c0_i32 : i32, i32
  }
  func.func @transform_3(%arg0: i32) -> (i32, i32) {
    %c0_i32 = arith.constant 0 : i32
    %c0_i32_0 = arith.constant 0 : i32
    return %arg0, %c0_i32 : i32, i32
  }
  func.func @transform_4(%arg0: i32) -> (i32, i32) {
    %c0_i32 = arith.constant 0 : i32
    %c0_i32_0 = arith.constant 0 : i32
    %c0_i32_1 = arith.constant 0 : i32
    return %c0_i32, %c0_i32_0 : i32, i32
  }
  func.func @transform_5(%arg0: i32) -> (i32, i32) {
    %c0_i32 = arith.constant 0 : i32
    %c0_i32_0 = arith.constant 0 : i32
    %c0_i32_1 = arith.constant 0 : i32
    return %c0_i32, %c0_i32_0 : i32, i32
  }
  func.func @transform_6(%arg0: i32) -> (i32, i32) {
    %c0_i32 = arith.constant 0 : i32
    %c0_i32_0 = arith.constant 0 : i32
    %c0_i32_1 = arith.constant 0 : i32
    return %c0_i32, %c0_i32_0 : i32, i32
  }
  func.func @transform_7(%arg0: i32) -> (i32, i32) {
    %c0_i32 = arith.constant 0 : i32
    %c0_i32_0 = arith.constant 0 : i32
    return %arg0, %c0_i32 : i32, i32
  }
}

</mosaic_0001>

<llo_original>
// kernel: ssd_loss.1
$region0: #{ssd_loss.1}
  #allocation0 [shape = 'u32[]', space=smem, size = 0x4, offset = 0x4, fixed_abs, tag = 'smem constant byte address 0x4 - core index']
  #allocation1 [shape = 'u32[144,128]{1,0:T(1,128)}', space=vmem, size = 0x12000, scoped, tag = 'internal scratch']
  %s0 = inlined_call_operand.hbm [shape: f32[2,4,256], index: 0, kind: input, shape index: {}]
  %s1 = inlined_call_operand.hbm [shape: f32[2,4,256], index: 1, kind: input, shape index: {}]
  %s2 = inlined_call_operand.hbm [shape: f32[2,256], index: 2, kind: input, shape index: {}]
  %s3 = inlined_call_operand.hbm [shape: s32[2,256], index: 3, kind: input, shape index: {}]
  %s4 = inlined_call_operand.hbm [shape: f32[4,256], index: 4, kind: input, shape index: {}]
  %s5 = inlined_call_operand.hbm [shape: f32[4,256], index: 5, kind: input, shape index: {}]
  %s6 = inlined_call_operand.hbm [shape: f32[4,256], index: 6, kind: input, shape index: {}]
  %s7 = inlined_call_operand.hbm [shape: f32[2,128], index: 7, kind: output, shape index: {}]
  %s8 = sld [smem:[#allocation0]]
  $region73: #{ssd_loss.1} parent=0
    _
  %s10 = ssub.s32 1, %s8
  %s11 = scalar_select 0, %s10, %s8
  $region1: #{ssd_loss.1} parent=0
    #allocation2 [shape = 'u8[8192]{0}', space=vmem, size = 0x2000, scoped, tag = 'input window, operand 0, single buffered']
    #allocation3 [shape = 's32[1]{0}', space=sflag, size = 0x4, scoped, tag = 'scoped memory for ssd_loss.1']
    #allocation4 [shape = 's32[1]{0}', space=sflag, size = 0x4, scoped, tag = 'scoped memory for ssd_loss.1']
    #allocation5 [shape = 'u8[8192]{0}', space=vmem, size = 0x2000, scoped, tag = 'input window, operand 1, single buffered']
    #allocation6 [shape = 's32[1]{0}', space=sflag, size = 0x4, scoped, tag = 'scoped memory for ssd_loss.1']
    #allocation7 [shape = 'u8[2048]{0}', space=vmem, size = 0x800, scoped, tag = 'input window, operand 2, single buffered']
    #allocation8 [shape = 'u8[2048]{0}', space=vmem, size = 0x800, scoped, tag = 'input window, operand 3, single buffered']
    #allocation9 [shape = 's32[1]{0}', space=sflag, size = 0x4, scoped, tag = 'scoped memory for ssd_loss.1']
    #allocation10 [shape = 'u8[4096]{0}', space=vmem, size = 0x1000, scoped, tag = 'input window, operand 4, single buffered']
    #allocation11 [shape = 'u8[4096]{0}', space=vmem, size = 0x1000, scoped, tag = 'input window, operand 5, single buffered']
    #allocation12 [shape = 's32[1]{0}', space=sflag, size = 0x4, scoped, tag = 'scoped memory for ssd_loss.1']
    #allocation13 [shape = 'u8[4096]{0}', space=vmem, size = 0x1000, scoped, tag = 'input window, operand 6, single buffered']
    #allocation14 [shape = 'u8[1024]{0}', space=vmem, size = 0x400, scoped, tag = 'output window, operand 0, single buffered']
    %12 = vsyncpa [#allocation3], 0
    %13 = vsyncpa [#allocation6], 0
    %14 = vsyncpa [#allocation9], 0
    %15 = vsyncpa [#allocation12], 0
    %16 = vsyncpa [#allocation4], 0
    // Predicated region
    $region2: #{ssd_loss.1} parent=1 // pred_check
      _
    $region3: #{ssd_loss.1} parent=1 // pred_check_branch
      %18 = sbr.rel (0) target = $region5
    $region4: #{ssd_loss.1} parent=1 // pred_region
      %s20 = ssub.s32 256, 256
      %21 = vsyncadd [#allocation3], %s20
      %s22 = sshll.u32 [#allocation2], 4
      %s23 = int_to_ptr.vmem [resolvable:$true] %s22
      %28 = dma.hbm_to_vmem [thread:$0]  %s0, 256, %s23, [#allocation3], 128, 128, 8
    $region5: #{ssd_loss.1} parent=1 // pred_fallthru
      _
    // Predicated region
    $region6: #{ssd_loss.1} parent=1 // pred_check
      _
    $region7: #{ssd_loss.1} parent=1 // pred_check_branch
      %30 = sbr.rel (0) target = $region9
    $region8: #{ssd_loss.1} parent=1 // pred_region
      %s32 = ssub.s32 256, 256
      %33 = vsyncadd [#allocation6], %s32
      %s34 = sshll.u32 [#allocation5], 4
      %s35 = int_to_ptr.vmem [resolvable:$true] %s34
      %40 = dma.hbm_to_vmem [thread:$0]  %s1, 256, %s35, [#allocation6], 128, 128, 8
    $region9: #{ssd_loss.1} parent=1 // pred_fallthru
      _
    // Predicated region
    $region10: #{ssd_loss.1} parent=1 // pred_check
      _
    $region11: #{ssd_loss.1} parent=1 // pred_check_branch
      %42 = sbr.rel (0) target = $region13
    $region12: #{ssd_loss.1} parent=1 // pred_region
      %s44 = ssub.s32 64, 64
      %45 = vsyncadd [#allocation6], %s44
      %s47 = sshll.u32 [#allocation7], 4
      %s48 = int_to_ptr.vmem [resolvable:$true] %s47
      %50 = dma.hbm_to_vmem [thread:$0]  %s2, 64, %s48, [#allocation6]
    $region13: #{ssd_loss.1} parent=1 // pred_fallthru
      _
    // Predicated region
    $region14: #{ssd_loss.1} parent=1 // pred_check
      _
    $region15: #{ssd_loss.1} parent=1 // pred_check_branch
      %52 = sbr.rel (0) target = $region17
    $region16: #{ssd_loss.1} parent=1 // pred_region
      %s54 = ssub.s32 64, 64
      %55 = vsyncadd [#allocation9], %s54
      %s57 = sshll.u32 [#allocation8], 4
      %s58 = int_to_ptr.vmem [resolvable:$true] %s57
      %60 = dma.hbm_to_vmem [thread:$0]  %s3, 64, %s58, [#allocation9]
    $region17: #{ssd_loss.1} parent=1 // pred_fallthru
      _
    // Predicated region
    $region18: #{ssd_loss.1} parent=1 // pred_check
      _
    $region19: #{ssd_loss.1} parent=1 // pred_check_branch
      %62 = sbr.rel (0) target = $region21
    $region20: #{ssd_loss.1} parent=1 // pred_region
      %s64 = ssub.s32 128, 128
      %65 = vsyncadd [#allocation9], %s64
      %s67 = sshll.u32 [#allocation10], 4
      %s68 = int_to_ptr.vmem [resolvable:$true] %s67
      %70 = dma.hbm_to_vmem [thread:$0]  %s4, 128, %s68, [#allocation9]
    $region21: #{ssd_loss.1} parent=1 // pred_fallthru
      _
    // Predicated region
    $region22: #{ssd_loss.1} parent=1 // pred_check
      _
    $region23: #{ssd_loss.1} parent=1 // pred_check_branch
      %72 = sbr.rel (0) target = $region25
    $region24: #{ssd_loss.1} parent=1 // pred_region
      %s74 = ssub.s32 128, 128
      %75 = vsyncadd [#allocation12], %s74
      %s77 = sshll.u32 [#allocation11], 4
      %s78 = int_to_ptr.vmem [resolvable:$true] %s77
      %80 = dma.hbm_to_vmem [thread:$0]  %s5, 128, %s78, [#allocation12]
    $region25: #{ssd_loss.1} parent=1 // pred_fallthru
      _
    // Predicated region
    $region26: #{ssd_loss.1} parent=1 // pred_check
      _
    $region27: #{ssd_loss.1} parent=1 // pred_check_branch
      %82 = sbr.rel (0) target = $region29
    $region28: #{ssd_loss.1} parent=1 // pred_region
      %s84 = ssub.s32 128, 128
      %85 = vsyncadd [#allocation12], %s84
      %s87 = sshll.u32 [#allocation13], 4
      %s88 = int_to_ptr.vmem [resolvable:$true] %s87
      %90 = dma.hbm_to_vmem [thread:$0]  %s6, 128, %s88, [#allocation12]
    $region29: #{ssd_loss.1} parent=1 // pred_fallthru
      _
    // Predicated region
    $region30: #{ssd_loss.1} parent=1 // pred_check
      _
    $region31: #{ssd_loss.1} parent=1 // pred_check_branch
      %92 = sbr.rel (0) target = $region33
    $region32: #{ssd_loss.1} parent=1 // pred_region
      %93 = dma.done [#allocation3], 256
    $region33: #{ssd_loss.1} parent=1 // pred_fallthru
      _
    // Predicated region
    $region34: #{ssd_loss.1} parent=1 // pred_check
      _
    $region35: #{ssd_loss.1} parent=1 // pred_check_branch
      %95 = sbr.rel (0) target = $region37
    $region36: #{ssd_loss.1} parent=1 // pred_region
      %96 = dma.done [#allocation6], 256
    $region37: #{ssd_loss.1} parent=1 // pred_fallthru
      _
    // Predicated region
    $region38: #{ssd_loss.1} parent=1 // pred_check
      _
    $region39: #{ssd_loss.1} parent=1 // pred_check_branch
      %98 = sbr.rel (0) target = $region41
    $region40: #{ssd_loss.1} parent=1 // pred_region
      %99 = dma.done [#allocation6], 64
    $region41: #{ssd_loss.1} parent=1 // pred_fallthru
      _
    // Predicated region
    $region42: #{ssd_loss.1} parent=1 // pred_check
      _
    $region43: #{ssd_loss.1} parent=1 // pred_check_branch
      %101 = sbr.rel (0) target = $region45
    $region44: #{ssd_loss.1} parent=1 // pred_region
      %102 = dma.done [#allocation9], 64
    $region45: #{ssd_loss.1} parent=1 // pred_fallthru
      _
    // Predicated region
    $region46: #{ssd_loss.1} parent=1 // pred_check
      _
    $region47: #{ssd_loss.1} parent=1 // pred_check_branch
      %104 = sbr.rel (0) target = $region49
    $region48: #{ssd_loss.1} parent=1 // pred_region
      %105 = dma.done [#allocation9], 128
    $region49: #{ssd_loss.1} parent=1 // pred_fallthru
      _
    // Predicated region
    $region50: #{ssd_loss.1} parent=1 // pred_check
      _
    $region51: #{ssd_loss.1} parent=1 // pred_check_branch
      %107 = sbr.rel (0) target = $region53
    $region52: #{ssd_loss.1} parent=1 // pred_region
      %108 = dma.done [#allocation12], 128
    $region53: #{ssd_loss.1} parent=1 // pred_fallthru
      _
    // Predicated region
    $region54: #{ssd_loss.1} parent=1 // pred_check
      _
    $region55: #{ssd_loss.1} parent=1 // pred_check_branch
      %110 = sbr.rel (0) target = $region57
    $region56: #{ssd_loss.1} parent=1 // pred_region
      %111 = dma.done [#allocation12], 128
    $region57: #{ssd_loss.1} parent=1 // pred_fallthru
      _
    %v112 = vld [vmem:[#allocation2] sm:$0xff]
    %v113 = vld [vmem:[#allocation2 + $0x8] sm:$0xff]
    %v114 = vld [vmem:[#allocation5] sm:$0xff]
    %v115 = vld [vmem:[#allocation5 + $0x8] sm:$0xff]
    %v116 = vld [vmem:[#allocation7] sm:$0xf]
    %v117 = vld [vmem:[#allocation8] sm:$0xf]
    %v118 = vld [vmem:[#allocation10] sm:$0xff]
    %v119 = vld [vmem:[#allocation11] sm:$0xff]
    %v120 = vld [vmem:[#allocation13] sm:$0xff]
    %vm121 = vcmp.gt.s32.totalorder %v117, 0
    %v122 = vcvt.s32.f32 %v117
    %v123 = vsel %vm121, 1.0, 0.0
    %v126 = vunpack.c.l.s4 1983009808
    %v127 = vunpack.c.0.s8 %v126
    %v128 = vlaneseq
    %v129 = vshrl.u32 %v128, 7
    %v130 = vsub.s32 %v127, %v129
    %v131 = vrot.slane %v123, %v130
    %v132 = vcombine.high %v131, %v131
    %vm135 = vcmask 1041408
    %v136 = vsel %vm135, %v131, 0.0
    %v137 = vsel %vm135, %v132, 0.0
    %v138 = vadd.f32 %v136, %v137
    %139 = vadd.xlane.f32.xlu0 %v138
    %v140 = vpop.xlane.xlu0 %139
    %v141 = vlaneseq
    %v142 = vshrl.u32 %v141, 7
    %vm143 = vcmp.lt.s32.totalorder %v142, 2
    %v144 = vsub.f32 %v114, %v118
    %v145 = vsub.f32 %v115, %v118
    %v146 = vmul.f32 %v144, %v119
    %v147 = vmul.f32 %v145, %v119
    %v148 = vlog2.pop %v114
    %v149 = vmul.f32 %v148, 0.6931472
    %v150 = vlog2.pop %v115
    %v151 = vmul.f32 %v150, 0.6931472
    %v152 = vsub.f32 %v149, %v120
    %v153 = vsub.f32 %v151, %v120
    %v154 = vsel %vm143, 1, 0
    %vm155 = vcmp.eq.s32.totalorder %v154, 1
    %v158 = vcombine.high %v146, %v146
    %v159 = vcombine.high %v147, %v147
    %v164 = vcombine.high %v152, %v152
    %v165 = vcombine.high %v153, %v153
    %v168 = vsel %vm155, %v146, %v152
    %v169 = vsel %vm155, %v158, %v164
    %v170 = vsel %vm155, %v147, %v153
    %v171 = vsel %vm155, %v159, %v165
    %v176 = vcombine.low %v168, %v169
    %v177 = vcombine.low %v170, %v171
    %v180 = vsub.f32 %v112, %v176
    %v181 = vsub.f32 %v113, %v177
    %v182 = vand.u32 2147483647, %v180
    %v183 = vand.u32 2147483647, %v181
    %vm184 = vcmp.lt.f32.partialorder %v182, 1.0
    %vm185 = vcmp.lt.f32.partialorder %v183, 1.0
    %v186 = vmul.f32 %v180, 0.5
    %v187 = vmul.f32 %v181, 0.5
    %v188 = vmul.f32 %v186, %v180
    %v189 = vmul.f32 %v187, %v181
    %v190 = vsub.f32 %v182, 0.5
    %v191 = vsub.f32 %v183, 0.5
    %v192 = vsel %vm184, %v188, %v190
    %v193 = vsel %vm185, %v189, %v191
    %v196 = vcombine.high %v192, %v192
    %v197 = vcombine.high %v193, %v193
    %vm200 = vcmask 1043456
    %v201 = vsel %vm200, %v192, 0.0
    %v202 = vrot.slane %v201, 4
    %v203 = vadd.f32 %v201, %v202
    %v204 = vrot.slane %v203, 2
    %v205 = vadd.f32 %v203, %v204
    %v206 = vrot.slane %v205, 1
    %v207 = vadd.f32 %v205, %v206
    %v208 = vsel %vm200, %v196, 0.0
    %v209 = vrot.slane %v208, 4
    %v210 = vadd.f32 %v208, %v209
    %v211 = vrot.slane %v210, 2
    %v212 = vadd.f32 %v210, %v211
    %v213 = vrot.slane %v212, 1
    %v214 = vadd.f32 %v212, %v213
    %v215 = vsel %vm200, %v193, 0.0
    %v216 = vrot.slane %v215, 4
    %v217 = vadd.f32 %v215, %v216
    %v218 = vrot.slane %v217, 2
    %v219 = vadd.f32 %v217, %v218
    %v220 = vrot.slane %v219, 1
    %v221 = vadd.f32 %v219, %v220
    %v222 = vsel %vm200, %v197, 0.0
    %v223 = vrot.slane %v222, 4
    %v224 = vadd.f32 %v222, %v223
    %v225 = vrot.slane %v224, 2
    %v226 = vadd.f32 %v224, %v225
    %v227 = vrot.slane %v226, 1
    %v228 = vadd.f32 %v226, %v227
    %v233 = vcombine.low %v207, %v214
    %v235 = vunpack.c.l.s4 1983009808
    %v236 = vunpack.c.0.s8 %v235
    %v237 = vlaneseq
    %v238 = vshrl.u32 %v237, 7
    %v239 = vsub.s32 %v236, %v238
    %v240 = vrot.slane %v233, %v239
    %v241 = vcombine.low %v221, %v228
    %v243 = vunpack.c.l.s4 1983009808
    %v244 = vunpack.c.0.s8 %v243
    %v245 = vlaneseq
    %v246 = vshrl.u32 %v245, 7
    %v247 = vsub.s32 %v244, %v246
    %v248 = vrot.slane %v241, %v247
    %vm249 = vcmask 1044484
    %v250 = vsel %vm249, %v240, %v240
    %vm251 = vcmask 1046534
    %v252 = vsel %vm251, %v240, %v250
    %v253 = vrot.slane %v248, 7
    %vm254 = vcmask 1041409
    %v255 = vsel %vm254, %v253, %v252
    %vm256 = vcmask 1043459
    %v257 = vsel %vm256, %v253, %v255
    %vm258 = vcmask 1045509
    %v259 = vsel %vm258, %v253, %v257
    %vm260 = vcmask 1047559
    %v261 = vsel %vm260, %v253, %v259
    %v263 = vsel %vm121, %v261, 0.0
    %v266 = vunpack.c.l.s4 1983009808
    %v267 = vunpack.c.0.s8 %v266
    %v268 = vlaneseq
    %v269 = vshrl.u32 %v268, 7
    %v270 = vsub.s32 %v267, %v269
    %v271 = vrot.slane %v263, %v270
    %v272 = vcombine.high %v271, %v271
    %v275 = vsel %vm135, %v271, 0.0
    %v276 = vsel %vm135, %v272, 0.0
    %v277 = vadd.f32 %v275, %v276
    %278 = vadd.xlane.f32.xlu0 %v277
    %v279 = vpop.xlane.xlu0 %278
    %v280 = vmax.f32 %v116, 0.0
    %v281 = vmul.f32 %v116, %v122
    %v282 = vsub.f32 %v280, %v281
    %v283 = vand.u32 2147483647, %v116
    %v284 = vsub.f32 0.0, %v283
    %v285 = vmul.f32 %v284, 1.442695
    %v286 = vpow.pop %v285
    %v287 = vadd.f32 %v286, 1.0
    %v288 = vlog2.pop %v287
    %v289 = vmul.f32 %v288, 0.6931472
    %v290 = vadd.f32 %v282, %v289
    %v291 = vsel %vm121, 0.0, %v290
    %v292 = vmul.f32 %v140, 3.0
    %v293 = vmin.f32 %v292, 256.0
    %v296 = vunpack.c.l.s4 1983009808
    %v297 = vunpack.c.0.s8 %v296
    %v298 = vlaneseq
    %v299 = vshrl.u32 %v298, 7
    %v300 = vsub.s32 %v297, %v299
    %v301 = vrot.slane %v291, %v300
    %v302 = vcombine.high %v301, %v301
    %v305 = vsel %vm135, %v301, -inf
    %v306 = vsel %vm135, %v302, -inf
    %v307 = vmax.f32 %v305, %v306
    %308 = vmax.xlane.f32.xlu0 %v307
    %v309 = vpop.xlane.xlu0 %308
    loop: start=0, step=1, limit=20
    $region58: #{ssd_loss.1} parent=1 // loop_pre_header
      _
    $region59: #{ssd_loss.1} parent=1 // loop_header
      %s311 = sphi 0, %s315
      %p312 = scmp.ge.s32.totalorder %s311, 20
      %v316 = vphi 0.0, %v348
      %v317 = vphi %v309, %v349
    $region60: #{ssd_loss.1} parent=1 // loop_header_branch
      %314 = sbr.rel (%p312) target = $region64
    $region61: #{ssd_loss.1} parent=1 // loop_body
      %v318 = vadd.f32 %v316, %v317
      %v319 = vmul.f32 %v318, 0.5
      %v322 = vunpack.c.l.s4 269488144
      %v323 = vunpack.c.0.s8 %v322
      %v324 = vlaneseq
      %v325 = vshrl.u32 %v324, 7
      %v326 = vsub.s32 %v323, %v325
      %v327 = vrot.slane %v319, %v326
      %vm329 = vcmp.gt.f32.partialorder %v291, %v327
      %v330 = vsel %vm329, 1.0, 0.0
      %v333 = vunpack.c.l.s4 1983009808
      %v334 = vunpack.c.0.s8 %v333
      %v335 = vlaneseq
      %v336 = vshrl.u32 %v335, 7
      %v337 = vsub.s32 %v334, %v336
      %v338 = vrot.slane %v330, %v337
      %v339 = vcombine.high %v338, %v338
      %v342 = vsel %vm135, %v338, 0.0
      %v343 = vsel %vm135, %v339, 0.0
      %v344 = vadd.f32 %v342, %v343
      %345 = vadd.xlane.f32.xlu0 %v344
      %v346 = vpop.xlane.xlu0 %345
      %vm347 = vcmp.gt.f32.partialorder %v346, %v293
      %v348 = vsel %vm347, %v319, %v316
      %v349 = vsel %vm347, %v317, %v319
    $region62: #{ssd_loss.1} parent=1 // loop_footer
      %s315 = sadd.s32 1, %s311
    $region63: #{ssd_loss.1} parent=1 // loop_footer_branch
      %310 = sbr.rel target = $region59
    $region64: #{ssd_loss.1} parent=1 // loop_exit
      _
    %v352 = vunpack.c.l.s4 269488144
    %v353 = vunpack.c.0.s8 %v352
    %v354 = vlaneseq
    %v355 = vshrl.u32 %v354, 7
    %v356 = vsub.s32 %v353, %v355
    %v357 = vrot.slane %v317, %v356
    %vm359 = vcmp.gt.f32.partialorder %v291, %v357
    %vm360 = vmor %vm121, %vm359
    %v361 = vsel %vm360, %v290, 0.0
    %v364 = vunpack.c.l.s4 1983009808
    %v365 = vunpack.c.0.s8 %v364
    %v366 = vlaneseq
    %v367 = vshrl.u32 %v366, 7
    %v368 = vsub.s32 %v365, %v367
    %v369 = vrot.slane %v361, %v368
    %v370 = vcombine.high %v369, %v369
    %v373 = vsel %vm135, %v369, 0.0
    %v374 = vsel %vm135, %v370, 0.0
    %v375 = vadd.f32 %v373, %v374
    %376 = vadd.xlane.f32.xlu0 %v375
    %v377 = vpop.xlane.xlu0 %376
    %v378 = vadd.f32 %v279, %v377
    %vm379 = vcmp.gt.f32.partialorder %v140, 0.0
    %v380 = vsel %vm379, 1, 0
    %v381 = vcvt.s32.f32 %v380
    %v382 = vmul.f32 %v378, %v381
    %v383 = vmax.f32 %v140, 1e-06
    %v384 = vrcp.pop %v383
    %v385 = vmul.f32 %v382, %v384
    %386 = vst [vmem:[#allocation14] sm:$0x3] %v385
    // Predicated region
    $region65: #{ssd_loss.1} parent=1 // pred_check
      _
    $region66: #{ssd_loss.1} parent=1 // pred_check_branch
      %388 = sbr.rel (0) target = $region68
    $region67: #{ssd_loss.1} parent=1 // pred_region
      %s390 = ssub.s32 32, 32
      %391 = vsyncadd [#allocation4], %s390
      %s393 = sshll.u32 [#allocation14], 4
      %s394 = int_to_ptr.vmem [resolvable:$true] %s393
      %396 = dma.vmem_to_hbm [thread:$0]  %s394, 32, %s7, [#allocation4]
    $region68: #{ssd_loss.1} parent=1 // pred_fallthru
      _
    // Predicated region
    $region69: #{ssd_loss.1} parent=1 // pred_check
      _
    $region70: #{ssd_loss.1} parent=1 // pred_check_branch
      %398 = sbr.rel (0) target = $region72
    $region71: #{ssd_loss.1} parent=1 // pred_region
      %399 = dma.done [#allocation4], 32
    $region72: #{ssd_loss.1} parent=1 // pred_fallthru
      _
    %400 = vsyncpa [#allocation3], 1
    %401 = vsyncpa [#allocation6], 1
    %402 = vsyncpa [#allocation9], 1
    %403 = vsyncpa [#allocation12], 1
    %404 = vsyncpa [#allocation4], 1

</llo_original>
